<compile_context>
chip_gen: v7x
topology: tpu7x:2x2x1
jax: 0.10.0
libtpu: 0.0.40
codegen_flags: <defaults>
</compile_context>

<pallas_src>
import functools

import jax
import jax.numpy as jnp
from jax import lax
from jax.experimental import pallas as pl
from jax.experimental.pallas import tpu as pltpu


def _round_up(x, m):
    return ((x + m - 1) // m) * m


def _lda_moments_kernel(feat_ref, coef_ref, lab_ref, sw_ref, csum_ref, *, num_classes):
    """One N-tile of streaming moments.

    Accumulates into VMEM-resident output blocks:
      sw_ref   (Dp, Dp): sum_i coef_i * x_i x_i^T        (single weighted Gram matmul)
      csum_ref (Cr, Dp): rows 0..C-1 = per-class feature sums, row C = total feature sum
    """
    @pl.when(pl.program_id(1) == 0)
    def _init():
        sw_ref[...] = jnp.zeros_like(sw_ref)
        csum_ref[...] = jnp.zeros_like(csum_ref)

    feats = feat_ref[...]                                    # (T, Dp), native dtype
    labels = lab_ref[...]                                    # (T, 1)  int32 (-1 = padding)
    coef = coef_ref[...]                                     # (T, 1)  f32

    t = feats.shape[0]
    c_rows = csum_ref.shape[0]                               # padded C + 1 rows

    # One-hot over classes plus an extra "valid sample" column (for the global sum).
    col = lax.broadcasted_iota(jnp.int32, (t, c_rows), 1)    # (T, Cr)
    onehot = jnp.logical_or(labels == col,
                            jnp.logical_and(col == num_classes, labels >= 0))
    onehot = onehot.astype(feats.dtype)

    # Per-class + total feature sums: one MXU matmul per tile.
    csum_ref[...] += lax.dot_general(onehot, feats, (((0,), (0,)), ((), ())),
                                     preferred_element_type=jnp.float32)

    # Weighted Gram: one (Dp, Dp) accumulator, one MXU matmul per tile.
    xw = coef.astype(feats.dtype) * feats
    sw_ref[...] += lax.dot_general(xw, feats, (((0,), (0,)), ((), ())),
                                   preferred_element_type=jnp.float32)


def _lda_moments(features, labels, coef, *, num_classes, tile_n=1024, num_cores=2):
    n, d = features.shape
    d_pad = _round_up(max(d, 128), 128)

    tile_n = max(128, min(_round_up(tile_n, 128), _round_up(n, 128)))
    tiles = -(-n // tile_n)
    if tiles < num_cores:
        num_cores = 1
    tiles_per_core = -(-tiles // num_cores)
    n_pad = num_cores * tiles_per_core * tile_n

    labels = labels.astype(jnp.int32)
    coef = coef.astype(jnp.float32)
    if n_pad != n or d_pad != d:
        features = jnp.pad(features, ((0, n_pad - n), (0, d_pad - d)))
    if n_pad != n:
        # Padded rows: label -1 (matches no class, excluded from the "valid" column)
        # and coef 0 (excluded from the weighted Gram).
        labels = jnp.pad(labels, (0, n_pad - n), constant_values=-1)
        coef = jnp.pad(coef, (0, n_pad - n))
    labels = labels.reshape(n_pad, 1)
    coef = coef.reshape(n_pad, 1)

    c_rows = _round_up(num_classes + 1, 8)
    feat_bytes = features.dtype.itemsize

    kernel = functools.partial(_lda_moments_kernel, num_classes=num_classes)

    # Explicit VMEM budget: double-buffered feature/label/coef tiles + resident
    # accumulator blocks.  Clamp to v7x's 64 MiB physical VMEM.
    vmem_est = (2 * tile_n * d_pad * feat_bytes
                + 2 * tile_n * 4 * 2
                + 2 * (d_pad * d_pad + c_rows * d_pad) * 4)
    vmem_limit = int(min(64 << 20, max(32 << 20, 2 * vmem_est)))

    cost = pl.CostEstimate(
        flops=2 * n_pad * d_pad * (d_pad + c_rows),
        transcendentals=0,
        bytes_accessed=(n_pad * d_pad * feat_bytes + n_pad * 8
                        + num_cores * (d_pad * d_pad + c_rows * d_pad) * 4))

    sw_raw, csum = pl.pallas_call(
        kernel,
        out_shape=(jax.ShapeDtypeStruct((num_cores, d_pad, d_pad), jnp.float32),
                   jax.ShapeDtypeStruct((num_cores, c_rows, d_pad), jnp.float32)),
        grid=(num_cores, tiles_per_core),
        in_specs=[
            pl.BlockSpec((tile_n, d_pad), lambda c, i: (c * tiles_per_core + i, 0)),
            pl.BlockSpec((tile_n, 1), lambda c, i: (c * tiles_per_core + i, 0)),
            pl.BlockSpec((tile_n, 1), lambda c, i: (c * tiles_per_core + i, 0)),
        ],
        out_specs=(
            pl.BlockSpec((None, d_pad, d_pad), lambda c, i: (c, 0, 0)),   # per-core slab
            pl.BlockSpec((None, c_rows, d_pad), lambda c, i: (c, 0, 0)),
        ),
        compiler_params=pltpu.CompilerParams(
            dimension_semantics=("parallel", "arbitrary"),
            vmem_limit_bytes=vmem_limit),
        cost_estimate=cost,
    )(features, coef, labels)

    # Sum per-core partials and slice back to the true feature dim.
    sw_raw = jnp.sum(sw_raw, axis=0)[:d, :d]
    csum = jnp.sum(csum, axis=0)
    class_sums = csum[:num_classes, :d]
    total_sum = csum[num_classes, :d]
    return sw_raw, class_sums, total_sum


def weighted_deep_lda_loss(features, labels, confusion_mat, *, num_classes,
                           r=1e-3, n_components=None, epsilon=1.0, tile_n=1024):
    if n_components is None:
        n_components = num_classes - 1
    n, d = features.shape
    labels = labels.astype(jnp.int32)

    # TODO(synk): get_modified_conf_mat() was not supplied; confusion matrix used as-is.
    conf = confusion_mat.astype(jnp.float32)
    row_sums = jnp.sum(conf, axis=1)
    weights = row_sums / (jnp.sum(row_sums) + 1e-12)                       # (C,)

    # Per-class counts + per-sample coefficient w_{y_i} / (n_{y_i} - 1) in the wrapper.
    onehot = labels[:, None] == jnp.arange(num_classes, dtype=jnp.int32)[None, :]
    counts = jnp.sum(onehot, axis=0).astype(jnp.float32)                   # (C,)
    dof = jnp.maximum(counts - 1.0, 1.0)
    per_class_coef = weights / dof                                         # w_c/(n_c-1)
    coef = onehot.astype(jnp.float32) @ per_class_coef                     # (N,)

    sw_raw, class_sums, total_sum = _lda_moments(
        features, labels, coef, num_classes=num_classes, tile_n=tile_n)

    mu_t = total_sum / jnp.asarray(n, jnp.float32)                         # (D,)
    mu_c = jnp.where((counts > 0.0)[:, None],
                     class_sums / jnp.maximum(counts, 1.0)[:, None], 0.0)  # (C, D)

    # Sw = sum_c w_c cov_c = sw_raw - sum_c [w_c n_c/(n_c-1)] mu_c mu_c^T  (+ ridge)
    mean_term = weights * counts / dof                                     # (C,)
    sw = sw_raw - (mu_c * mean_term[:, None]).T @ mu_c
    sw = sw + r * jnp.eye(d, dtype=jnp.float32)

    # Sb = sum_c w_c (mu_c - mu_t)(mu_c - mu_t)^T
    diff = mu_c - mu_t[None, :]
    sb = (diff * weights[:, None]).T @ diff

    # TODO(synk): torch.linalg.eigvals (general non-symmetric eig) has no TPU/Pallas
    # equivalent; Sw is SPD after the ridge and Sb is symmetric PSD, so the pencil
    # eigenvalues are real and equal to eigh(Sw^{-1/2} Sb Sw^{-1/2}).
    w_evals, w_evecs = jnp.linalg.eigh(sw)
    inv_sqrt = (w_evecs * (1.0 / jnp.sqrt(jnp.maximum(w_evals, 1e-12)))) @ w_evecs.T
    m = inv_sqrt @ sb @ inv_sqrt
    m = 0.5 * (m + m.T)
    evals = jnp.linalg.eigh(m)[0]               # ascending, real
    top = evals[-n_components:]                 # largest n_components (ascending)
    thresh = top[0] + epsilon                   # min(top_n_comp_evals) + epsilon
    mask = (top <= thresh).astype(jnp.float32)
    loss = -jnp.sum(top * mask) / jnp.sum(mask)
    return loss


if __name__ == "__main__":
    num_classes = 4
    n, d = 256, 32                               # small: 256 samples, 32-dim features

    key = jax.random.PRNGKey(0)
    k_cent, k_noise, k_conf = jax.random.split(key, 3)

    # Deterministic labels: every class gets n // num_classes (>= 2) samples.
    labels = jnp.arange(n, dtype=jnp.int32) % num_classes
    centroids = 3.0 * jax.random.normal(k_cent, (num_classes, d), dtype=jnp.float32)
    features = centroids[labels] + 0.5 * jax.random.normal(k_noise, (n, d),
                                                           dtype=jnp.float32)

    # A plausible, diagonally dominant confusion matrix.
    confusion_mat = (jax.random.uniform(k_conf, (num_classes, num_classes),
                                        dtype=jnp.float32, minval=0.0, maxval=5.0)
                     + 50.0 * jnp.eye(num_classes, dtype=jnp.float32))

    loss = weighted_deep_lda_loss(features, labels, confusion_mat,
                                  num_classes=num_classes, r=1e-3,
                                  n_components=None, epsilon=1.0, tile_n=1024)
    jax.block_until_ready(loss)
    print("KERNEL_OK")
</pallas_src>

<mosaic_0001>
module attributes {stable_mosaic.version = 11 : i64} {
  func.func @_lda_moments_kernel(%arg0: i32, %arg1: i32, %arg2: memref<256x128xf32, #tpu.memory_space<vmem>>, %arg3: memref<256x1xf32, #tpu.memory_space<vmem>>, %arg4: memref<256x1xi32, #tpu.memory_space<vmem>>, %arg5: memref<1x128x128xf32, #tpu.memory_space<vmem>>, %arg6: memref<1x8x128xf32, #tpu.memory_space<vmem>>) attributes {dimension_semantics = [#tpu.dimension_semantics<parallel>, #tpu.dimension_semantics<arbitrary>], iteration_bounds = array<i64: 1, 1>, scalar_prefetch = 0 : i64, scratch_operands = 0 : i64, tpu.core_type = #tpu.core_type<tc>, window_params = [{transform_indices = @transform_0, window_bounds = array<i64: 256, 128>}, {transform_indices = @transform_1, window_bounds = array<i64: 256, 1>}, {transform_indices = @transform_2, window_bounds = array<i64: 256, 1>}, {transform_indices = @transform_3, window_bounds = array<i64: 1, 128, 128>}, {transform_indices = @transform_4, window_bounds = array<i64: 1, 8, 128>}]} {
    %c0_i32 = arith.constant 0 : i32
    %0 = arith.cmpi eq, %arg1, %c0_i32 : i32
    %1 = arith.extui %0 : i1 to i32
    %c0_i32_0 = arith.constant 0 : i32
    %2 = arith.cmpi ne, %1, %c0_i32_0 : i32
    scf.if %2 {
      %cst_20 = arith.constant 0.000000e+00 : f32
      %34 = vector.broadcast %cst_20 : f32 to vector<128x128xf32>
      %c0_21 = arith.constant 0 : index
      %c0_22 = arith.constant 0 : index
      %c0_23 = arith.constant 0 : index
      %35 = vector.load %arg5[%c0_21, %c0_22, %c0_23] : memref<1x128x128xf32, #tpu.memory_space<vmem>>, vector<1x128x128xf32>
      %36 = vector.shape_cast %35 : vector<1x128x128xf32> to vector<128x128xf32>
      %37 = vector.shape_cast %34 : vector<128x128xf32> to vector<1x128x128xf32>
      tpu.vector_store %arg5[%c0_21, %c0_22, %c0_23], %37 {strides = array<i32>} : memref<1x128x128xf32, #tpu.memory_space<vmem>>, vector<1x128x128xf32>,
      %cst_24 = arith.constant 0.000000e+00 : f32
      %38 = vector.broadcast %cst_24 : f32 to vector<8x128xf32>
      %c0_25 = arith.constant 0 : index
      %c0_26 = arith.constant 0 : index
      %c0_27 = arith.constant 0 : index
      %39 = vector.load %arg6[%c0_25, %c0_26, %c0_27] : memref<1x8x128xf32, #tpu.memory_space<vmem>>, vector<1x8x128xf32>
      %40 = vector.shape_cast %39 : vector<1x8x128xf32> to vector<8x128xf32>
      %41 = vector.shape_cast %38 : vector<8x128xf32> to vector<1x8x128xf32>
      tpu.vector_store %arg6[%c0_25, %c0_26, %c0_27], %41 {strides = array<i32>} : memref<1x8x128xf32, #tpu.memory_space<vmem>>, vector<1x8x128xf32>,
    } else {
    }
    %c0 = arith.constant 0 : index
    %c0_1 = arith.constant 0 : index
    %3 = vector.load %arg2[%c0, %c0_1] : memref<256x128xf32, #tpu.memory_space<vmem>>, vector<256x128xf32>
    %c0_2 = arith.constant 0 : index
    %c0_3 = arith.constant 0 : index
    %4 = vector.load %arg4[%c0_2, %c0_3] : memref<256x1xi32, #tpu.memory_space<vmem>>, vector<256x1xi32>
    %c0_4 = arith.constant 0 : index
    %c0_5 = arith.constant 0 : index
    %5 = vector.load %arg3[%c0_4, %c0_5] : memref<256x1xf32, #tpu.memory_space<vmem>>, vector<256x1xf32>
    %6 = tpu.iota {dimensions = array<i32: 1>} : vector<256x8xi32>
    %7 = vector.broadcast %4 : vector<256x1xi32> to vector<256x8xi32>
    %8 = arith.cmpi eq, %7, %6 : vector<256x8xi32>
    %c4_i32 = arith.constant 4 : i32
    %9 = vector.broadcast %c4_i32 : i32 to vector<256x8xi32>
    %10 = arith.cmpi eq, %6, %9 : vector<256x8xi32>
    %c0_i32_6 = arith.constant 0 : i32
    %11 = vector.broadcast %c0_i32_6 : i32 to vector<256x1xi32>
    %12 = arith.cmpi sge, %4, %11 : vector<256x1xi32>
    %13 = vector.broadcast %12 : vector<256x1xi1> to vector<256x8xi1>
    %14 = arith.andi %10, %13 : vector<256x8xi1>
    %15 = arith.ori %8, %14 : vector<256x8xi1>
    %16 = arith.extui %15 : vector<256x8xi1> to vector<256x8xi32>
    %17 = arith.sitofp %16 : vector<256x8xi32> to vector<256x8xf32>
    %c0_7 = arith.constant 0 : index
    %c0_8 = arith.constant 0 : index
    %c0_9 = arith.constant 0 : index
    %18 = vector.load %arg6[%c0_7, %c0_8, %c0_9] : memref<1x8x128xf32, #tpu.memory_space<vmem>>, vector<1x8x128xf32>
    %19 = vector.shape_cast %18 : vector<1x8x128xf32> to vector<8x128xf32>
    %cst = arith.constant dense<0.000000e+00> : vector<8x128xf32>
    %20 = tpu.matmul %17, %3, %cst {dimension_numbers = #tpu.dot_dimension_numbers<[0], [0], [1], [1], [0, 1, 1, 1], [], []>} : vector<256x8xf32>, vector<256x128xf32>, vector<8x128xf32> -> vector<8x128xf32>
    %21 = arith.addf %19, %20 : vector<8x128xf32>
    %c0_10 = arith.constant 0 : index
    %c0_11 = arith.constant 0 : index
    %c0_12 = arith.constant 0 : index
    %22 = vector.load %arg6[%c0_10, %c0_11, %c0_12] : memref<1x8x128xf32, #tpu.memory_space<vmem>>, vector<1x8x128xf32>
    %23 = vector.shape_cast %22 : vector<1x8x128xf32> to vector<8x128xf32>
    %24 = vector.shape_cast %21 : vector<8x128xf32> to vector<1x8x128xf32>
    tpu.vector_store %arg6[%c0_10, %c0_11, %c0_12], %24 {strides = array<i32>} : memref<1x8x128xf32, #tpu.memory_space<vmem>>, vector<1x8x128xf32>,
    %25 = vector.broadcast %5 : vector<256x1xf32> to vector<256x128xf32>
    %26 = arith.mulf %25, %3 : vector<256x128xf32>
    %c0_13 = arith.constant 0 : index
    %c0_14 = arith.constant 0 : index
    %c0_15 = arith.constant 0 : index
    %27 = vector.load %arg5[%c0_13, %c0_14, %c0_15] : memref<1x128x128xf32, #tpu.memory_space<vmem>>, vector<1x128x128xf32>
    %28 = vector.shape_cast %27 : vector<1x128x128xf32> to vector<128x128xf32>
    %cst_16 = arith.constant dense<0.000000e+00> : vector<128x128xf32>
    %29 = tpu.matmul %26, %3, %cst_16 {dimension_numbers = #tpu.dot_dimension_numbers<[0], [0], [1], [1], [0, 1, 1, 1], [], []>} : vector<256x128xf32>, vector<256x128xf32>, vector<128x128xf32> -> vector<128x128xf32>
    %30 = arith.addf %28, %29 : vector<128x128xf32>
    %c0_17 = arith.constant 0 : index
    %c0_18 = arith.constant 0 : index
    %c0_19 = arith.constant 0 : index
    %31 = vector.load %arg5[%c0_17, %c0_18, %c0_19] : memref<1x128x128xf32, #tpu.memory_space<vmem>>, vector<1x128x128xf32>
    %32 = vector.shape_cast %31 : vector<1x128x128xf32> to vector<128x128xf32>
    %33 = vector.shape_cast %30 : vector<128x128xf32> to vector<1x128x128xf32>
    tpu.vector_store %arg5[%c0_17, %c0_18, %c0_19], %33 {strides = array<i32>} : memref<1x128x128xf32, #tpu.memory_space<vmem>>, vector<1x128x128xf32>,
    return
  }
  func.func @transform_0(%arg0: i32, %arg1: i32) -> (i32, i32) {
    %c1_i32 = arith.constant 1 : i32
    %0 = arith.muli %arg0, %c1_i32 : i32
    %1 = arith.addi %0, %arg1 : i32
    %c0_i32 = arith.constant 0 : i32
    %c0_i32_0 = arith.constant 0 : i32
    return %1, %c0_i32 : i32, i32
  }
  func.func @transform_1(%arg0: i32, %arg1: i32) -> (i32, i32) {
    %c1_i32 = arith.constant 1 : i32
    %0 = arith.muli %arg0, %c1_i32 : i32
    %1 = arith.addi %0, %arg1 : i32
    %c0_i32 = arith.constant 0 : i32
    %c0_i32_0 = arith.constant 0 : i32
    return %1, %c0_i32 : i32, i32
  }
  func.func @transform_2(%arg0: i32, %arg1: i32) -> (i32, i32) {
    %c1_i32 = arith.constant 1 : i32
    %0 = arith.muli %arg0, %c1_i32 : i32
    %1 = arith.addi %0, %arg1 : i32
    %c0_i32 = arith.constant 0 : i32
    %c0_i32_0 = arith.constant 0 : i32
    return %1, %c0_i32 : i32, i32
  }
  func.func @transform_3(%arg0: i32, %arg1: i32) -> (i32, i32, i32) {
    %c0_i32 = arith.constant 0 : i32
    %c0_i32_0 = arith.constant 0 : i32
    %c0_i32_1 = arith.constant 0 : i32
    return %arg0, %c0_i32, %c0_i32_0 : i32, i32, i32
  }
  func.func @transform_4(%arg0: i32, %arg1: i32) -> (i32, i32, i32) {
    %c0_i32 = arith.constant 0 : i32
    %c0_i32_0 = arith.constant 0 : i32
    %c0_i32_1 = arith.constant 0 : i32
    return %arg0, %c0_i32, %c0_i32_0 : i32, i32, i32
  }
}

</mosaic_0001>

<llo_original>
// kernel: tpu_custom_call.1
$region0: #{tpu_custom_call.1}
  #allocation0 [shape = 'u32[]', space=smem, size = 0x4, offset = 0x4, fixed_abs, tag = 'smem constant byte address 0x4 - core index']
  #allocation1 [shape = 'u32[144,128]{1,0:T(1,128)}', space=vmem, size = 0x12000, scoped, tag = 'internal scratch']
  %s0 = inlined_call_operand.vmem [shape: f32[256,128], index: 0, kind: input, shape index: {}]
  %s1 = inlined_call_operand.vmem [shape: f32[256,1], index: 1, kind: input, shape index: {}]
  %s2 = inlined_call_operand.vmem [shape: s32[256,1], index: 2, kind: input, shape index: {}]
  %s3 = inlined_call_operand.hbm [shape: f32[1,128,128], index: 3, kind: output, shape index: {0}]
  %s4 = inlined_call_operand.hbm [shape: f32[1,8,128], index: 4, kind: output, shape index: {1}]
  %5 = xla_tuple %s3, %s4
  %s6 = sld [smem:[#allocation0]]
  $region34: #{tpu_custom_call.1} parent=0
    _
  %s8 = ssub.s32 1, %s6
  %s9 = scalar_select 0, %s8, %s6
  $region1: #{tpu_custom_call.1} parent=0
    #allocation2 [shape = 'u8[65536]{0}', space=vmem, size = 0x10000, scoped, tag = 'output window, operand 0, single buffered']
    #allocation3 [shape = 's32[1]{0}', space=sflag, size = 0x4, scoped, tag = 'scoped memory for tpu_custom_call.1']
    #allocation4 [shape = 'u8[4096]{0}', space=vmem, size = 0x1000, scoped, tag = 'output window, operand 1, single buffered']
    #allocation5 [shape = 's32[1]{0}', space=sflag, size = 0x4, scoped, tag = 'scoped memory for tpu_custom_call.1']
    %10 = vsyncpa [#allocation3], 0
    %11 = vsyncpa [#allocation5], 0
    // Predicated region
    $region2: #{tpu_custom_call.1} parent=1 // pred_check
      _
    $region3: #{tpu_custom_call.1} parent=1 // pred_check_branch
      %13 = sbr.rel (0) target = $region5
    $region4: #{tpu_custom_call.1} parent=1 // pred_region
      %s14 = sadd.s32 0, 0
      %s15 = smul.u32 32, %s14
      %p16 = scmp.lt.s32.totalorder %s15, 31
      %s17 = scalar_select %p16, %s15, 31
      %s18 = smul.addr %s17, 8
      %s19 = scalar_lea.vmem %s0, %s18
      %s20 = sadd.s32 0, 0
      %s21 = smul.u32 32, %s20
    $region5: #{tpu_custom_call.1} parent=1 // pred_fallthru
      _
    // Predicated region
    $region6: #{tpu_custom_call.1} parent=1 // pred_check
      _
    $region7: #{tpu_custom_call.1} parent=1 // pred_check_branch
      %23 = sbr.rel (0) target = $region9
    $region8: #{tpu_custom_call.1} parent=1 // pred_region
      %s24 = sadd.s32 0, 0
      %s25 = smul.u32 32, %s24
      %p26 = scmp.lt.s32.totalorder %s25, 31
      %s27 = scalar_select %p26, %s25, 31
      %s28 = smul.addr %s27, 8
      %s29 = scalar_lea.vmem %s1, %s28
      %s30 = sadd.s32 0, 0
      %s31 = smul.u32 32, %s30
    $region9: #{tpu_custom_call.1} parent=1 // pred_fallthru
      _
    // Predicated region
    $region10: #{tpu_custom_call.1} parent=1 // pred_check
      _
    $region11: #{tpu_custom_call.1} parent=1 // pred_check_branch
      %33 = sbr.rel (0) target = $region13
    $region12: #{tpu_custom_call.1} parent=1 // pred_region
      %s34 = sadd.s32 0, 0
      %s35 = smul.u32 32, %s34
      %p36 = scmp.lt.s32.totalorder %s35, 31
      %s37 = scalar_select %p36, %s35, 31
      %s38 = smul.addr %s37, 8
      %s39 = scalar_lea.vmem %s2, %s38
      %s40 = sadd.s32 0, 0
      %s41 = smul.u32 32, %s40
    $region13: #{tpu_custom_call.1} parent=1 // pred_fallthru
      _
    %s42 = sadd.s32 0, 0
    %s43 = smul.u32 32, %s42
    %p44 = scmp.lt.s32.totalorder %s43, 31
    %s45 = scalar_select %p44, %s43, 31
    %s46 = smul.addr %s45, 8
    %s47 = scalar_lea.vmem %s0, %s46
    %s48 = sadd.s32 0, 0
    %s49 = smul.u32 32, %s48
    %p50 = scmp.lt.s32.totalorder %s49, 31
    %s51 = scalar_select %p50, %s49, 31
    %s52 = smul.addr %s51, 8
    %s53 = scalar_lea.vmem %s1, %s52
    %s54 = sadd.s32 0, 0
    %s55 = smul.u32 32, %s54
    %p56 = scmp.lt.s32.totalorder %s55, 31
    %s57 = scalar_select %p56, %s55, 31
    %s58 = smul.addr %s57, 8
    %s59 = scalar_lea.vmem %s2, %s58
    %s60 = sadd.s32 0, 0
    %s61 = smul.u32 32, %s60
    %p62 = scmp.lt.s32.totalorder %s61, 31
    %s63 = scalar_select %p62, %s61, 31
    %s64 = smul.addr %s63, 8
    %s65 = scalar_lea.vmem %s0, %s64
    %s66 = sadd.s32 0, 0
    %s67 = smul.u32 32, %s66
    %s68 = sadd.s32 0, 0
    %s69 = smul.u32 32, %s68
    %p70 = scmp.lt.s32.totalorder %s69, 31
    %s71 = scalar_select %p70, %s69, 31
    %s72 = smul.addr %s71, 8
    %s73 = scalar_lea.vmem %s1, %s72
    %s74 = sadd.s32 0, 0
    %s75 = smul.u32 32, %s74
    %s76 = sadd.s32 0, 0
    %s77 = smul.u32 32, %s76
    %p78 = scmp.lt.s32.totalorder %s77, 31
    %s79 = scalar_select %p78, %s77, 31
    %s80 = smul.addr %s79, 8
    %s81 = scalar_lea.vmem %s2, %s80
    %s82 = sadd.s32 0, 0
    %s83 = smul.u32 32, %s82
    %p84 = scmp.eq.s32.totalorder 0, 0
    // Predicated region
    $region14: #{tpu_custom_call.1} parent=1 // pred_check
      %p85 = pneg %p84
    $region15: #{tpu_custom_call.1} parent=1 // pred_check_branch
      %87 = sbr.rel (%p85) target = $region17
    $region16: #{tpu_custom_call.1} parent=1 // pred_region
      %88 = vst [vmem:[#allocation2] sm:$0xff] 0.0
      %89 = vst [vmem:[#allocation2 + $0x8] sm:$0xff] 0.0
      %90 = vst [vmem:[#allocation2 + $0x10] sm:$0xff] 0.0
      %91 = vst [vmem:[#allocation2 + $0x18] sm:$0xff] 0.0
      %92 = vst [vmem:[#allocation2 + $0x20] sm:$0xff] 0.0
      %93 = vst [vmem:[#allocation2 + $0x28] sm:$0xff] 0.0
      %94 = vst [vmem:[#allocation2 + $0x30] sm:$0xff] 0.0
      %95 = vst [vmem:[#allocation2 + $0x38] sm:$0xff] 0.0
      %96 = vst [vmem:[#allocation2 + $0x40] sm:$0xff] 0.0
      %97 = vst [vmem:[#allocation2 + $0x48] sm:$0xff] 0.0
      %98 = vst [vmem:[#allocation2 + $0x50] sm:$0xff] 0.0
      %99 = vst [vmem:[#allocation2 + $0x58] sm:$0xff] 0.0
      %100 = vst [vmem:[#allocation2 + $0x60] sm:$0xff] 0.0
      %101 = vst [vmem:[#allocation2 + $0x68] sm:$0xff] 0.0
      %102 = vst [vmem:[#allocation2 + $0x70] sm:$0xff] 0.0
      %103 = vst [vmem:[#allocation2 + $0x78] sm:$0xff] 0.0
      %104 = vst [vmem:[#allocation4] sm:$0xff] 0.0
    $region17: #{tpu_custom_call.1} parent=1 // pred_fallthru
      _
    %v105 = vld [vmem:[%s65] sm:$0xff]
    %v106 = vld [vmem:[%s65 + $0x8] sm:$0xff]
    %v107 = vld [vmem:[%s65 + $0x10] sm:$0xff]
    %v108 = vld [vmem:[%s65 + $0x18] sm:$0xff]
    %v109 = vld [vmem:[%s65 + $0x20] sm:$0xff]
    %v110 = vld [vmem:[%s65 + $0x28] sm:$0xff]
    %v111 = vld [vmem:[%s65 + $0x30] sm:$0xff]
    %v112 = vld [vmem:[%s65 + $0x38] sm:$0xff]
    %v113 = vld [vmem:[%s65 + $0x40] sm:$0xff]
    %v114 = vld [vmem:[%s65 + $0x48] sm:$0xff]
    %v115 = vld [vmem:[%s65 + $0x50] sm:$0xff]
    %v116 = vld [vmem:[%s65 + $0x58] sm:$0xff]
    %v117 = vld [vmem:[%s65 + $0x60] sm:$0xff]
    %v118 = vld [vmem:[%s65 + $0x68] sm:$0xff]
    %v119 = vld [vmem:[%s65 + $0x70] sm:$0xff]
    %v120 = vld [vmem:[%s65 + $0x78] sm:$0xff]
    %v121 = vld [vmem:[%s65 + $0x80] sm:$0xff]
    %v122 = vld [vmem:[%s65 + $0x88] sm:$0xff]
    %v123 = vld [vmem:[%s65 + $0x90] sm:$0xff]
    %v124 = vld [vmem:[%s65 + $0x98] sm:$0xff]
    %v125 = vld [vmem:[%s65 + $0xa0] sm:$0xff]
    %v126 = vld [vmem:[%s65 + $0xa8] sm:$0xff]
    %v127 = vld [vmem:[%s65 + $0xb0] sm:$0xff]
    %v128 = vld [vmem:[%s65 + $0xb8] sm:$0xff]
    %v129 = vld [vmem:[%s65 + $0xc0] sm:$0xff]
    %v130 = vld [vmem:[%s65 + $0xc8] sm:$0xff]
    %v131 = vld [vmem:[%s65 + $0xd0] sm:$0xff]
    %v132 = vld [vmem:[%s65 + $0xd8] sm:$0xff]
    %v133 = vld [vmem:[%s65 + $0xe0] sm:$0xff]
    %v134 = vld [vmem:[%s65 + $0xe8] sm:$0xff]
    %v135 = vld [vmem:[%s65 + $0xf0] sm:$0xff]
    %v136 = vld [vmem:[%s65 + $0xf8] sm:$0xff]
    %v137 = vld [vmem:[%s81] sm:$0xff]
    %v138 = vld [vmem:[%s81 + $0x8] sm:$0xff]
    %v139 = vld [vmem:[%s81 + $0x10] sm:$0xff]
    %v140 = vld [vmem:[%s81 + $0x18] sm:$0xff]
    %v141 = vld [vmem:[%s81 + $0x20] sm:$0xff]
    %v142 = vld [vmem:[%s81 + $0x28] sm:$0xff]
    %v143 = vld [vmem:[%s81 + $0x30] sm:$0xff]
    %v144 = vld [vmem:[%s81 + $0x38] sm:$0xff]
    %v145 = vld [vmem:[%s81 + $0x40] sm:$0xff]
    %v146 = vld [vmem:[%s81 + $0x48] sm:$0xff]
    %v147 = vld [vmem:[%s81 + $0x50] sm:$0xff]
    %v148 = vld [vmem:[%s81 + $0x58] sm:$0xff]
    %v149 = vld [vmem:[%s81 + $0x60] sm:$0xff]
    %v150 = vld [vmem:[%s81 + $0x68] sm:$0xff]
    %v151 = vld [vmem:[%s81 + $0x70] sm:$0xff]
    %v152 = vld [vmem:[%s81 + $0x78] sm:$0xff]
    %v153 = vld [vmem:[%s81 + $0x80] sm:$0xff]
    %v154 = vld [vmem:[%s81 + $0x88] sm:$0xff]
    %v155 = vld [vmem:[%s81 + $0x90] sm:$0xff]
    %v156 = vld [vmem:[%s81 + $0x98] sm:$0xff]
    %v157 = vld [vmem:[%s81 + $0xa0] sm:$0xff]
    %v158 = vld [vmem:[%s81 + $0xa8] sm:$0xff]
    %v159 = vld [vmem:[%s81 + $0xb0] sm:$0xff]
    %v160 = vld [vmem:[%s81 + $0xb8] sm:$0xff]
    %v161 = vld [vmem:[%s81 + $0xc0] sm:$0xff]
    %v162 = vld [vmem:[%s81 + $0xc8] sm:$0xff]
    %v163 = vld [vmem:[%s81 + $0xd0] sm:$0xff]
    %v164 = vld [vmem:[%s81 + $0xd8] sm:$0xff]
    %v165 = vld [vmem:[%s81 + $0xe0] sm:$0xff]
    %v166 = vld [vmem:[%s81 + $0xe8] sm:$0xff]
    %v167 = vld [vmem:[%s81 + $0xf0] sm:$0xff]
    %v168 = vld [vmem:[%s81 + $0xf8] sm:$0xff]
    %v169 = vld [vmem:[%s73] sm:$0xff]
    %v170 = vld [vmem:[%s73 + $0x8] sm:$0xff]
    %v171 = vld [vmem:[%s73 + $0x10] sm:$0xff]
    %v172 = vld [vmem:[%s73 + $0x18] sm:$0xff]
    %v173 = vld [vmem:[%s73 + $0x20] sm:$0xff]
    %v174 = vld [vmem:[%s73 + $0x28] sm:$0xff]
    %v175 = vld [vmem:[%s73 + $0x30] sm:$0xff]
    %v176 = vld [vmem:[%s73 + $0x38] sm:$0xff]
    %v177 = vld [vmem:[%s73 + $0x40] sm:$0xff]
    %v178 = vld [vmem:[%s73 + $0x48] sm:$0xff]
    %v179 = vld [vmem:[%s73 + $0x50] sm:$0xff]
    %v180 = vld [vmem:[%s73 + $0x58] sm:$0xff]
    %v181 = vld [vmem:[%s73 + $0x60] sm:$0xff]
    %v182 = vld [vmem:[%s73 + $0x68] sm:$0xff]
    %v183 = vld [vmem:[%s73 + $0x70] sm:$0xff]
    %v184 = vld [vmem:[%s73 + $0x78] sm:$0xff]
    %v185 = vld [vmem:[%s73 + $0x80] sm:$0xff]
    %v186 = vld [vmem:[%s73 + $0x88] sm:$0xff]
    %v187 = vld [vmem:[%s73 + $0x90] sm:$0xff]
    %v188 = vld [vmem:[%s73 + $0x98] sm:$0xff]
    %v189 = vld [vmem:[%s73 + $0xa0] sm:$0xff]
    %v190 = vld [vmem:[%s73 + $0xa8] sm:$0xff]
    %v191 = vld [vmem:[%s73 + $0xb0] sm:$0xff]
    %v192 = vld [vmem:[%s73 + $0xb8] sm:$0xff]
    %v193 = vld [vmem:[%s73 + $0xc0] sm:$0xff]
    %v194 = vld [vmem:[%s73 + $0xc8] sm:$0xff]
    %v195 = vld [vmem:[%s73 + $0xd0] sm:$0xff]
    %v196 = vld [vmem:[%s73 + $0xd8] sm:$0xff]
    %v197 = vld [vmem:[%s73 + $0xe0] sm:$0xff]
    %v198 = vld [vmem:[%s73 + $0xe8] sm:$0xff]
    %v199 = vld [vmem:[%s73 + $0xf0] sm:$0xff]
    %v200 = vld [vmem:[%s73 + $0xf8] sm:$0xff]
    %v201 = vlaneseq
    %v202 = vand.u32 %v201, 127
    %203 = vset.pattern.permute.xlu0 0
    %204 = vperm.xlu0 %203, %v137
    %v205 = vpop.permute.xlu0 %204
    %206 = vset.pattern.permute.xlu0 0
    %207 = vperm.xlu0 %206, %v138
    %v208 = vpop.permute.xlu0 %207
    %209 = vset.pattern.permute.xlu0 0
    %210 = vperm.xlu0 %209, %v139
    %v211 = vpop.permute.xlu0 %210
    %212 = vset.pattern.permute.xlu0 0
    %213 = vperm.xlu0 %212, %v140
    %v214 = vpop.permute.xlu0 %213
    %215 = vset.pattern.permute.xlu0 0
    %216 = vperm.xlu0 %215, %v141
    %v217 = vpop.permute.xlu0 %216
    %218 = vset.pattern.permute.xlu0 0
    %219 = vperm.xlu0 %218, %v142
    %v220 = vpop.permute.xlu0 %219
    %221 = vset.pattern.permute.xlu0 0
    %222 = vperm.xlu0 %221, %v143
    %v223 = vpop.permute.xlu0 %222
    %224 = vset.pattern.permute.xlu0 0
    %225 = vperm.xlu0 %224, %v144
    %v226 = vpop.permute.xlu0 %225
    %227 = vset.pattern.permute.xlu0 0
    %228 = vperm.xlu0 %227, %v145
    %v229 = vpop.permute.xlu0 %228
    %230 = vset.pattern.permute.xlu0 0
    %231 = vperm.xlu0 %230, %v146
    %v232 = vpop.permute.xlu0 %231
    %233 = vset.pattern.permute.xlu0 0
    %234 = vperm.xlu0 %233, %v147
    %v235 = vpop.permute.xlu0 %234
    %236 = vset.pattern.permute.xlu0 0
    %237 = vperm.xlu0 %236, %v148
    %v238 = vpop.permute.xlu0 %237
    %239 = vset.pattern.permute.xlu0 0
    %240 = vperm.xlu0 %239, %v149
    %v241 = vpop.permute.xlu0 %240
    %242 = vset.pattern.permute.xlu0 0
    %243 = vperm.xlu0 %242, %v150
    %v244 = vpop.permute.xlu0 %243
    %245 = vset.pattern.permute.xlu0 0
    %246 = vperm.xlu0 %245, %v151
    %v247 = vpop.permute.xlu0 %246
    %248 = vset.pattern.permute.xlu0 0
    %249 = vperm.xlu0 %248, %v152
    %v250 = vpop.permute.xlu0 %249
    %251 = vset.pattern.permute.xlu0 0
    %252 = vperm.xlu0 %251, %v153
    %v253 = vpop.permute.xlu0 %252
    %254 = vset.pattern.permute.xlu0 0
    %255 = vperm.xlu0 %254, %v154
    %v256 = vpop.permute.xlu0 %255
    %257 = vset.pattern.permute.xlu0 0
    %258 = vperm.xlu0 %257, %v155
    %v259 = vpop.permute.xlu0 %258
    %260 = vset.pattern.permute.xlu0 0
    %261 = vperm.xlu0 %260, %v156
    %v262 = vpop.permute.xlu0 %261
    %263 = vset.pattern.permute.xlu0 0
    %264 = vperm.xlu0 %263, %v157
    %v265 = vpop.permute.xlu0 %264
    %266 = vset.pattern.permute.xlu0 0
    %267 = vperm.xlu0 %266, %v158
    %v268 = vpop.permute.xlu0 %267
    %269 = vset.pattern.permute.xlu0 0
    %270 = vperm.xlu0 %269, %v159
    %v271 = vpop.permute.xlu0 %270
    %272 = vset.pattern.permute.xlu0 0
    %273 = vperm.xlu0 %272, %v160
    %v274 = vpop.permute.xlu0 %273
    %275 = vset.pattern.permute.xlu0 0
    %276 = vperm.xlu0 %275, %v161
    %v277 = vpop.permute.xlu0 %276
    %278 = vset.pattern.permute.xlu0 0
    %279 = vperm.xlu0 %278, %v162
    %v280 = vpop.permute.xlu0 %279
    %281 = vset.pattern.permute.xlu0 0
    %282 = vperm.xlu0 %281, %v163
    %v283 = vpop.permute.xlu0 %282
    %284 = vset.pattern.permute.xlu0 0
    %285 = vperm.xlu0 %284, %v164
    %v286 = vpop.permute.xlu0 %285
    %287 = vset.pattern.permute.xlu0 0
    %288 = vperm.xlu0 %287, %v165
    %v289 = vpop.permute.xlu0 %288
    %290 = vset.pattern.permute.xlu0 0
    %291 = vperm.xlu0 %290, %v166
    %v292 = vpop.permute.xlu0 %291
    %293 = vset.pattern.permute.xlu0 0
    %294 = vperm.xlu0 %293, %v167
    %v295 = vpop.permute.xlu0 %294
    %296 = vset.pattern.permute.xlu0 0
    %297 = vperm.xlu0 %296, %v168
    %v298 = vpop.permute.xlu0 %297
    %vm299 = vcmp.eq.s32.totalorder %v205, %v202
    %vm300 = vcmp.eq.s32.totalorder %v208, %v202
    %vm301 = vcmp.eq.s32.totalorder %v211, %v202
    %vm302 = vcmp.eq.s32.totalorder %v214, %v202
    %vm303 = vcmp.eq.s32.totalorder %v217, %v202
    %vm304 = vcmp.eq.s32.totalorder %v220, %v202
    %vm305 = vcmp.eq.s32.totalorder %v223, %v202
    %vm306 = vcmp.eq.s32.totalorder %v226, %v202
    %vm307 = vcmp.eq.s32.totalorder %v229, %v202
    %vm308 = vcmp.eq.s32.totalorder %v232, %v202
    %vm309 = vcmp.eq.s32.totalorder %v235, %v202
    %vm310 = vcmp.eq.s32.totalorder %v238, %v202
    %vm311 = vcmp.eq.s32.totalorder %v241, %v202
    %vm312 = vcmp.eq.s32.totalorder %v244, %v202
    %vm313 = vcmp.eq.s32.totalorder %v247, %v202
    %vm314 = vcmp.eq.s32.totalorder %v250, %v202
    %vm315 = vcmp.eq.s32.totalorder %v253, %v202
    %vm316 = vcmp.eq.s32.totalorder %v256, %v202
    %vm317 = vcmp.eq.s32.totalorder %v259, %v202
    %vm318 = vcmp.eq.s32.totalorder %v262, %v202
    %vm319 = vcmp.eq.s32.totalorder %v265, %v202
    %vm320 = vcmp.eq.s32.totalorder %v268, %v202
    %vm321 = vcmp.eq.s32.totalorder %v271, %v202
    %vm322 = vcmp.eq.s32.totalorder %v274, %v202
    %vm323 = vcmp.eq.s32.totalorder %v277, %v202
    %vm324 = vcmp.eq.s32.totalorder %v280, %v202
    %vm325 = vcmp.eq.s32.totalorder %v283, %v202
    %vm326 = vcmp.eq.s32.totalorder %v286, %v202
    %vm327 = vcmp.eq.s32.totalorder %v289, %v202
    %vm328 = vcmp.eq.s32.totalorder %v292, %v202
    %vm329 = vcmp.eq.s32.totalorder %v295, %v202
    %vm330 = vcmp.eq.s32.totalorder %v298, %v202
    %vm331 = vcmp.eq.s32.totalorder %v202, 4
    %vm332 = vcmp.ge.s32.totalorder %v137, 0
    %vm333 = vcmp.ge.s32.totalorder %v138, 0
    %vm334 = vcmp.ge.s32.totalorder %v139, 0
    %vm335 = vcmp.ge.s32.totalorder %v140, 0
    %vm336 = vcmp.ge.s32.totalorder %v141, 0
    %vm337 = vcmp.ge.s32.totalorder %v142, 0
    %vm338 = vcmp.ge.s32.totalorder %v143, 0
    %vm339 = vcmp.ge.s32.totalorder %v144, 0
    %vm340 = vcmp.ge.s32.totalorder %v145, 0
    %vm341 = vcmp.ge.s32.totalorder %v146, 0
    %vm342 = vcmp.ge.s32.totalorder %v147, 0
    %vm343 = vcmp.ge.s32.totalorder %v148, 0
    %vm344 = vcmp.ge.s32.totalorder %v149, 0
    %vm345 = vcmp.ge.s32.totalorder %v150, 0
    %vm346 = vcmp.ge.s32.totalorder %v151, 0
    %vm347 = vcmp.ge.s32.totalorder %v152, 0
    %vm348 = vcmp.ge.s32.totalorder %v153, 0
    %vm349 = vcmp.ge.s32.totalorder %v154, 0
    %vm350 = vcmp.ge.s32.totalorder %v155, 0
    %vm351 = vcmp.ge.s32.totalorder %v156, 0
    %vm352 = vcmp.ge.s32.totalorder %v157, 0
    %vm353 = vcmp.ge.s32.totalorder %v158, 0
    %vm354 = vcmp.ge.s32.totalorder %v159, 0
    %vm355 = vcmp.ge.s32.totalorder %v160, 0
    %vm356 = vcmp.ge.s32.totalorder %v161, 0
    %vm357 = vcmp.ge.s32.totalorder %v162, 0
    %vm358 = vcmp.ge.s32.totalorder %v163, 0
    %vm359 = vcmp.ge.s32.totalorder %v164, 0
    %vm360 = vcmp.ge.s32.totalorder %v165, 0
    %vm361 = vcmp.ge.s32.totalorder %v166, 0
    %vm362 = vcmp.ge.s32.totalorder %v167, 0
    %vm363 = vcmp.ge.s32.totalorder %v168, 0
    %v364 = vsel %vm332, 1, 0
    %v365 = vsel %vm333, 1, 0
    %v366 = vsel %vm334, 1, 0
    %v367 = vsel %vm335, 1, 0
    %v368 = vsel %vm336, 1, 0
    %v369 = vsel %vm337, 1, 0
    %v370 = vsel %vm338, 1, 0
    %v371 = vsel %vm339, 1, 0
    %v372 = vsel %vm340, 1, 0
    %v373 = vsel %vm341, 1, 0
    %v374 = vsel %vm342, 1, 0
    %v375 = vsel %vm343, 1, 0
    %v376 = vsel %vm344, 1, 0
    %v377 = vsel %vm345, 1, 0
    %v378 = vsel %vm346, 1, 0
    %v379 = vsel %vm347, 1, 0
    %v380 = vsel %vm348, 1, 0
    %v381 = vsel %vm349, 1, 0
    %v382 = vsel %vm350, 1, 0
    %v383 = vsel %vm351, 1, 0
    %v384 = vsel %vm352, 1, 0
    %v385 = vsel %vm353, 1, 0
    %v386 = vsel %vm354, 1, 0
    %v387 = vsel %vm355, 1, 0
    %v388 = vsel %vm356, 1, 0
    %v389 = vsel %vm357, 1, 0
    %v390 = vsel %vm358, 1, 0
    %v391 = vsel %vm359, 1, 0
    %v392 = vsel %vm360, 1, 0
    %v393 = vsel %vm361, 1, 0
    %v394 = vsel %vm362, 1, 0
    %v395 = vsel %vm363, 1, 0
    %396 = vset.pattern.permute.xlu0 0
    %397 = vperm.xlu0 %396, %v364
    %v398 = vpop.permute.xlu0 %397
    %399 = vset.pattern.permute.xlu0 0
    %400 = vperm.xlu0 %399, %v365
    %v401 = vpop.permute.xlu0 %400
    %402 = vset.pattern.permute.xlu0 0
    %403 = vperm.xlu0 %402, %v366
    %v404 = vpop.permute.xlu0 %403
    %405 = vset.pattern.permute.xlu0 0
    %406 = vperm.xlu0 %405, %v367
    %v407 = vpop.permute.xlu0 %406
    %408 = vset.pattern.permute.xlu0 0
    %409 = vperm.xlu0 %408, %v368
    %v410 = vpop.permute.xlu0 %409
    %411 = vset.pattern.permute.xlu0 0
    %412 = vperm.xlu0 %411, %v369
    %v413 = vpop.permute.xlu0 %412
    %414 = vset.pattern.permute.xlu0 0
    %415 = vperm.xlu0 %414, %v370
    %v416 = vpop.permute.xlu0 %415
    %417 = vset.pattern.permute.xlu0 0
    %418 = vperm.xlu0 %417, %v371
    %v419 = vpop.permute.xlu0 %418
    %420 = vset.pattern.permute.xlu0 0
    %421 = vperm.xlu0 %420, %v372
    %v422 = vpop.permute.xlu0 %421
    %423 = vset.pattern.permute.xlu0 0
    %424 = vperm.xlu0 %423, %v373
    %v425 = vpop.permute.xlu0 %424
    %426 = vset.pattern.permute.xlu0 0
    %427 = vperm.xlu0 %426, %v374
    %v428 = vpop.permute.xlu0 %427
    %429 = vset.pattern.permute.xlu0 0
    %430 = vperm.xlu0 %429, %v375
    %v431 = vpop.permute.xlu0 %430
    %432 = vset.pattern.permute.xlu0 0
    %433 = vperm.xlu0 %432, %v376
    %v434 = vpop.permute.xlu0 %433
    %435 = vset.pattern.permute.xlu0 0
    %436 = vperm.xlu0 %435, %v377
    %v437 = vpop.permute.xlu0 %436
    %438 = vset.pattern.permute.xlu0 0
    %439 = vperm.xlu0 %438, %v378
    %v440 = vpop.permute.xlu0 %439
    %441 = vset.pattern.permute.xlu0 0
    %442 = vperm.xlu0 %441, %v379
    %v443 = vpop.permute.xlu0 %442
    %444 = vset.pattern.permute.xlu0 0
    %445 = vperm.xlu0 %444, %v380
    %v446 = vpop.permute.xlu0 %445
    %447 = vset.pattern.permute.xlu0 0
    %448 = vperm.xlu0 %447, %v381
    %v449 = vpop.permute.xlu0 %448
    %450 = vset.pattern.permute.xlu0 0
    %451 = vperm.xlu0 %450, %v382
    %v452 = vpop.permute.xlu0 %451
    %453 = vset.pattern.permute.xlu0 0
    %454 = vperm.xlu0 %453, %v383
    %v455 = vpop.permute.xlu0 %454
    %456 = vset.pattern.permute.xlu0 0
    %457 = vperm.xlu0 %456, %v384
    %v458 = vpop.permute.xlu0 %457
    %459 = vset.pattern.permute.xlu0 0
    %460 = vperm.xlu0 %459, %v385
    %v461 = vpop.permute.xlu0 %460
    %462 = vset.pattern.permute.xlu0 0
    %463 = vperm.xlu0 %462, %v386
    %v464 = vpop.permute.xlu0 %463
    %465 = vset.pattern.permute.xlu0 0
    %466 = vperm.xlu0 %465, %v387
    %v467 = vpop.permute.xlu0 %466
    %468 = vset.pattern.permute.xlu0 0
    %469 = vperm.xlu0 %468, %v388
    %v470 = vpop.permute.xlu0 %469
    %471 = vset.pattern.permute.xlu0 0
    %472 = vperm.xlu0 %471, %v389
    %v473 = vpop.permute.xlu0 %472
    %474 = vset.pattern.permute.xlu0 0
    %475 = vperm.xlu0 %474, %v390
    %v476 = vpop.permute.xlu0 %475
    %477 = vset.pattern.permute.xlu0 0
    %478 = vperm.xlu0 %477, %v391
    %v479 = vpop.permute.xlu0 %478
    %480 = vset.pattern.permute.xlu0 0
    %481 = vperm.xlu0 %480, %v392
    %v482 = vpop.permute.xlu0 %481
    %483 = vset.pattern.permute.xlu0 0
    %484 = vperm.xlu0 %483, %v393
    %v485 = vpop.permute.xlu0 %484
    %486 = vset.pattern.permute.xlu0 0
    %487 = vperm.xlu0 %486, %v394
    %v488 = vpop.permute.xlu0 %487
    %489 = vset.pattern.permute.xlu0 0
    %490 = vperm.xlu0 %489, %v395
    %v491 = vpop.permute.xlu0 %490
    %vm492 = vcmp.eq.s32.totalorder %v398, 1
    %vm493 = vcmp.eq.s32.totalorder %v401, 1
    %vm494 = vcmp.eq.s32.totalorder %v404, 1
    %vm495 = vcmp.eq.s32.totalorder %v407, 1
    %vm496 = vcmp.eq.s32.totalorder %v410, 1
    %vm497 = vcmp.eq.s32.totalorder %v413, 1
    %vm498 = vcmp.eq.s32.totalorder %v416, 1
    %vm499 = vcmp.eq.s32.totalorder %v419, 1
    %vm500 = vcmp.eq.s32.totalorder %v422, 1
    %vm501 = vcmp.eq.s32.totalorder %v425, 1
    %vm502 = vcmp.eq.s32.totalorder %v428, 1
    %vm503 = vcmp.eq.s32.totalorder %v431, 1
    %vm504 = vcmp.eq.s32.totalorder %v434, 1
    %vm505 = vcmp.eq.s32.totalorder %v437, 1
    %vm506 = vcmp.eq.s32.totalorder %v440, 1
    %vm507 = vcmp.eq.s32.totalorder %v443, 1
    %vm508 = vcmp.eq.s32.totalorder %v446, 1
    %vm509 = vcmp.eq.s32.totalorder %v449, 1
    %vm510 = vcmp.eq.s32.totalorder %v452, 1
    %vm511 = vcmp.eq.s32.totalorder %v455, 1
    %vm512 = vcmp.eq.s32.totalorder %v458, 1
    %vm513 = vcmp.eq.s32.totalorder %v461, 1
    %vm514 = vcmp.eq.s32.totalorder %v464, 1
    %vm515 = vcmp.eq.s32.totalorder %v467, 1
    %vm516 = vcmp.eq.s32.totalorder %v470, 1
    %vm517 = vcmp.eq.s32.totalorder %v473, 1
    %vm518 = vcmp.eq.s32.totalorder %v476, 1
    %vm519 = vcmp.eq.s32.totalorder %v479, 1
    %vm520 = vcmp.eq.s32.totalorder %v482, 1
    %vm521 = vcmp.eq.s32.totalorder %v485, 1
    %vm522 = vcmp.eq.s32.totalorder %v488, 1
    %vm523 = vcmp.eq.s32.totalorder %v491, 1
    %vm524 = vmand %vm331, %vm492
    %vm525 = vmand %vm331, %vm493
    %vm526 = vmand %vm331, %vm494
    %vm527 = vmand %vm331, %vm495
    %vm528 = vmand %vm331, %vm496
    %vm529 = vmand %vm331, %vm497
    %vm530 = vmand %vm331, %vm498
    %vm531 = vmand %vm331, %vm499
    %vm532 = vmand %vm331, %vm500
    %vm533 = vmand %vm331, %vm501
    %vm534 = vmand %vm331, %vm502
    %vm535 = vmand %vm331, %vm503
    %vm536 = vmand %vm331, %vm504
    %vm537 = vmand %vm331, %vm505
    %vm538 = vmand %vm331, %vm506
    %vm539 = vmand %vm331, %vm507
    %vm540 = vmand %vm331, %vm508
    %vm541 = vmand %vm331, %vm509
    %vm542 = vmand %vm331, %vm510
    %vm543 = vmand %vm331, %vm511
    %vm544 = vmand %vm331, %vm512
    %vm545 = vmand %vm331, %vm513
    %vm546 = vmand %vm331, %vm514
    %vm547 = vmand %vm331, %vm515
    %vm548 = vmand %vm331, %vm516
    %vm549 = vmand %vm331, %vm517
    %vm550 = vmand %vm331, %vm518
    %vm551 = vmand %vm331, %vm519
    %vm552 = vmand %vm331, %vm520
    %vm553 = vmand %vm331, %vm521
    %vm554 = vmand %vm331, %vm522
    %vm555 = vmand %vm331, %vm523
    %vm556 = vmor %vm299, %vm524
    %vm557 = vmor %vm300, %vm525
    %vm558 = vmor %vm301, %vm526
    %vm559 = vmor %vm302, %vm527
    %vm560 = vmor %vm303, %vm528
    %vm561 = vmor %vm304, %vm529
    %vm562 = vmor %vm305, %vm530
    %vm563 = vmor %vm306, %vm531
    %vm564 = vmor %vm307, %vm532
    %vm565 = vmor %vm308, %vm533
    %vm566 = vmor %vm309, %vm534
    %vm567 = vmor %vm310, %vm535
    %vm568 = vmor %vm311, %vm536
    %vm569 = vmor %vm312, %vm537
    %vm570 = vmor %vm313, %vm538
    %vm571 = vmor %vm314, %vm539
    %vm572 = vmor %vm315, %vm540
    %vm573 = vmor %vm316, %vm541
    %vm574 = vmor %vm317, %vm542
    %vm575 = vmor %vm318, %vm543
    %vm576 = vmor %vm319, %vm544
    %vm577 = vmor %vm320, %vm545
    %vm578 = vmor %vm321, %vm546
    %vm579 = vmor %vm322, %vm547
    %vm580 = vmor %vm323, %vm548
    %vm581 = vmor %vm324, %vm549
    %vm582 = vmor %vm325, %vm550
    %vm583 = vmor %vm326, %vm551
    %vm584 = vmor %vm327, %vm552
    %vm585 = vmor %vm328, %vm553
    %vm586 = vmor %vm329, %vm554
    %vm587 = vmor %vm330, %vm555
    %v588 = vsel %vm556, 1, 0
    %v589 = vsel %vm557, 1, 0
    %v590 = vsel %vm558, 1, 0
    %v591 = vsel %vm559, 1, 0
    %v592 = vsel %vm560, 1, 0
    %v593 = vsel %vm561, 1, 0
    %v594 = vsel %vm562, 1, 0
    %v595 = vsel %vm563, 1, 0
    %v596 = vsel %vm564, 1, 0
    %v597 = vsel %vm565, 1, 0
    %v598 = vsel %vm566, 1, 0
    %v599 = vsel %vm567, 1, 0
    %v600 = vsel %vm568, 1, 0
    %v601 = vsel %vm569, 1, 0
    %v602 = vsel %vm570, 1, 0
    %v603 = vsel %vm571, 1, 0
    %v604 = vsel %vm572, 1, 0
    %v605 = vsel %vm573, 1, 0
    %v606 = vsel %vm574, 1, 0
    %v607 = vsel %vm575, 1, 0
    %v608 = vsel %vm576, 1, 0
    %v609 = vsel %vm577, 1, 0
    %v610 = vsel %vm578, 1, 0
    %v611 = vsel %vm579, 1, 0
    %v612 = vsel %vm580, 1, 0
    %v613 = vsel %vm581, 1, 0
    %v614 = vsel %vm582, 1, 0
    %v615 = vsel %vm583, 1, 0
    %v616 = vsel %vm584, 1, 0
    %v617 = vsel %vm585, 1, 0
    %v618 = vsel %vm586, 1, 0
    %v619 = vsel %vm587, 1, 0
    %v620 = vcvt.s32.f32 %v588
    %v621 = vcvt.s32.f32 %v589
    %v622 = vcvt.s32.f32 %v590
    %v623 = vcvt.s32.f32 %v591
    %v624 = vcvt.s32.f32 %v592
    %v625 = vcvt.s32.f32 %v593
    %v626 = vcvt.s32.f32 %v594
    %v627 = vcvt.s32.f32 %v595
    %v628 = vcvt.s32.f32 %v596
    %v629 = vcvt.s32.f32 %v597
    %v630 = vcvt.s32.f32 %v598
    %v631 = vcvt.s32.f32 %v599
    %v632 = vcvt.s32.f32 %v600
    %v633 = vcvt.s32.f32 %v601
    %v634 = vcvt.s32.f32 %v602
    %v635 = vcvt.s32.f32 %v603
    %v636 = vcvt.s32.f32 %v604
    %v637 = vcvt.s32.f32 %v605
    %v638 = vcvt.s32.f32 %v606
    %v639 = vcvt.s32.f32 %v607
    %v640 = vcvt.s32.f32 %v608
    %v641 = vcvt.s32.f32 %v609
    %v642 = vcvt.s32.f32 %v610
    %v643 = vcvt.s32.f32 %v611
    %v644 = vcvt.s32.f32 %v612
    %v645 = vcvt.s32.f32 %v613
    %v646 = vcvt.s32.f32 %v614
    %v647 = vcvt.s32.f32 %v615
    %v648 = vcvt.s32.f32 %v616
    %v649 = vcvt.s32.f32 %v617
    %v650 = vcvt.s32.f32 %v618
    %v651 = vcvt.s32.f32 %v619
    %v652 = vld [vmem:[#allocation4] sm:$0xff]
    %653 = vxpose.xlu0.b32.start [1/16] %v620, 128
    %654 = vxpose.xlu0.b32.cont [2/16] %v621, 128
    %655 = vxpose.xlu0.b32.cont [3/16] %v622, 128
    %656 = vxpose.xlu0.b32.cont [4/16] %v623, 128
    %657 = vxpose.xlu0.b32.cont [5/16] %v624, 128
    %658 = vxpose.xlu0.b32.cont [6/16] %v625, 128
    %659 = vxpose.xlu0.b32.cont [7/16] %v626, 128
    %660 = vxpose.xlu0.b32.cont [8/16] %v627, 128
    %661 = vxpose.xlu0.b32.cont [9/16] %v628, 128
    %662 = vxpose.xlu0.b32.cont [10/16] %v629, 128
    %663 = vxpose.xlu0.b32.cont [11/16] %v630, 128
    %664 = vxpose.xlu0.b32.cont [12/16] %v631, 128
    %665 = vxpose.xlu0.b32.cont [13/16] %v632, 128
    %666 = vxpose.xlu0.b32.cont [14/16] %v633, 128
    %667 = vxpose.xlu0.b32.cont [15/16] %v634, 128
    %668 = vxpose.xlu0.b32.end [16/16] %v635, 128
    %v669 = vpop.trf.xlu0
    %v670 = vpop.trf.xlu0
    %v671 = vpop.trf.xlu0
    %v672 = vpop.trf.xlu0
    %v673 = vpop.trf.xlu0
    %v674 = vpop.trf.xlu0
    %v675 = vpop.trf.xlu0
    %v676 = vpop.trf.xlu0
    %v677 = vpop.trf.xlu0
    %v678 = vpop.trf.xlu0
    %v679 = vpop.trf.xlu0
    %v680 = vpop.trf.xlu0
    %v681 = vpop.trf.xlu0
    %v682 = vpop.trf.xlu0
    %v683 = vpop.trf.xlu0
    %v684 = vpop.trf.xlu0
    %685 = vxpose.xlu0.b32.start [1/16] %v636, 128
    %686 = vxpose.xlu0.b32.cont [2/16] %v637, 128
    %687 = vxpose.xlu0.b32.cont [3/16] %v638, 128
    %688 = vxpose.xlu0.b32.cont [4/16] %v639, 128
    %689 = vxpose.xlu0.b32.cont [5/16] %v640, 128
    %690 = vxpose.xlu0.b32.cont [6/16] %v641, 128
    %691 = vxpose.xlu0.b32.cont [7/16] %v642, 128
    %692 = vxpose.xlu0.b32.cont [8/16] %v643, 128
    %693 = vxpose.xlu0.b32.cont [9/16] %v644, 128
    %694 = vxpose.xlu0.b32.cont [10/16] %v645, 128
    %695 = vxpose.xlu0.b32.cont [11/16] %v646, 128
    %696 = vxpose.xlu0.b32.cont [12/16] %v647, 128
    %697 = vxpose.xlu0.b32.cont [13/16] %v648, 128
    %698 = vxpose.xlu0.b32.cont [14/16] %v649, 128
    %699 = vxpose.xlu0.b32.cont [15/16] %v650, 128
    %700 = vxpose.xlu0.b32.end [16/16] %v651, 128
    %v701 = vpop.trf.xlu0
    %v702 = vpop.trf.xlu0
    %v703 = vpop.trf.xlu0
    %v704 = vpop.trf.xlu0
    %v705 = vpop.trf.xlu0
    %v706 = vpop.trf.xlu0
    %v707 = vpop.trf.xlu0
    %v708 = vpop.trf.xlu0
    %v709 = vpop.trf.xlu0
    %v710 = vpop.trf.xlu0
    %v711 = vpop.trf.xlu0
    %v712 = vpop.trf.xlu0
    %v713 = vpop.trf.xlu0
    %v714 = vpop.trf.xlu0
    %v715 = vpop.trf.xlu0
    %v716 = vpop.trf.xlu0
    %717 = vmatprep.subr.mxu0 0.0
    %718 = vmatpush1.msra.mxu0 %v105
    %719 = vmatprep.subr.mxu0 0.0
    %720 = vmatpush1.msra.mxu0 %v106
    %721 = vmatprep.subr.mxu0 0.0
    %722 = vmatpush1.msra.mxu0 %v107
    %723 = vmatprep.subr.mxu0 0.0
    %724 = vmatpush1.msra.mxu0 %v108
    %725 = vmatprep.subr.mxu0 0.0
    %726 = vmatpush1.msra.mxu0 %v109
    %727 = vmatprep.subr.mxu0 0.0
    %728 = vmatpush1.msra.mxu0 %v110
    %729 = vmatprep.subr.mxu0 0.0
    %730 = vmatpush1.msra.mxu0 %v111
    %731 = vmatprep.subr.mxu0 0.0
    %732 = vmatpush1.msra.mxu0 %v112
    %733 = vmatprep.subr.mxu0 0.0
    %734 = vmatpush1.msra.mxu0 %v113
    %735 = vmatprep.subr.mxu0 0.0
    %736 = vmatpush1.msra.mxu0 %v114
    %737 = vmatprep.subr.mxu0 0.0
    %738 = vmatpush1.msra.mxu0 %v115
    %739 = vmatprep.subr.mxu0 0.0
    %740 = vmatpush1.msra.mxu0 %v116
    %741 = vmatprep.subr.mxu0 0.0
    %742 = vmatpush1.msra.mxu0 %v117
    %743 = vmatprep.subr.mxu0 0.0
    %744 = vmatpush1.msra.mxu0 %v118
    %745 = vmatprep.subr.mxu0 0.0
    %746 = vmatpush1.msra.mxu0 %v119
    %747 = vmatprep.subr.mxu0 0.0
    %748 = vmatpush1.msra.mxu0 %v120
    %749 = vmatprep.subr.mxu0 0.0
    %750 = vmatpush1.msra.mxu0 %v121
    %751 = vmatprep.subr.mxu0 0.0
    %752 = vmatpush1.msra.mxu0 %v122
    %753 = vmatprep.subr.mxu0 0.0
    %754 = vmatpush1.msra.mxu0 %v123
    %755 = vmatprep.subr.mxu0 0.0
    %756 = vmatpush1.msra.mxu0 %v124
    %757 = vmatprep.subr.mxu0 0.0
    %758 = vmatpush1.msra.mxu0 %v125
    %759 = vmatprep.subr.mxu0 0.0
    %760 = vmatpush1.msra.mxu0 %v126
    %761 = vmatprep.subr.mxu0 0.0
    %762 = vmatpush1.msra.mxu0 %v127
    %763 = vmatprep.subr.mxu0 0.0
    %764 = vmatpush1.msra.mxu0 %v128
    %765 = vmatprep.subr.mxu0 0.0
    %766 = vmatpush1.msra.mxu0 %v129
    %767 = vmatprep.subr.mxu0 0.0
    %768 = vmatpush1.msra.mxu0 %v130
    %769 = vmatprep.subr.mxu0 0.0
    %770 = vmatpush1.msra.mxu0 %v131
    %771 = vmatprep.subr.mxu0 0.0
    %772 = vmatpush1.msra.mxu0 %v132
    %773 = vmatprep.subr.mxu0 0.0
    %774 = vmatpush1.msra.mxu0 %v133
    %775 = vmatprep.subr.mxu0 0.0
    %776 = vmatpush1.msra.mxu0 %v134
    %777 = vmatprep.subr.mxu0 0.0
    %778 = vmatpush1.msra.mxu0 %v135
    %779 = vmatprep.subr.mxu0 0.0
    %780 = vmatpush1.msra.mxu0 %v136
    %781 = vmatprep.mubr.f32.mxu0 %v701
    %782 = vmatmul.mubr.f32.gmra.mrb[0].mxu0 %v669
    %v783 = vpop.f32.mrb[0].mxu0
    %v784 = vadd.f32 0.0, %v783
    %v785 = vpop.f32.mrb[0].mxu0
    %786 = vdwg.mxu0
    %v787 = vadd.f32 %v652, %v784
    %788 = vst [vmem:[#allocation4] sm:$0xff] %v787
    %790 = vset.pattern.permute.xlu0 0
    %791 = vperm.xlu0 %790, %v169
    %v792 = vpop.permute.xlu0 %791
    %795 = vset.pattern.permute.xlu0 0
    %796 = vperm.xlu0 %795, %v170
    %v797 = vpop.permute.xlu0 %796
    %800 = vset.pattern.permute.xlu0 0
    %801 = vperm.xlu0 %800, %v171
    %v802 = vpop.permute.xlu0 %801
    %805 = vset.pattern.permute.xlu0 0
    %806 = vperm.xlu0 %805, %v172
    %v807 = vpop.permute.xlu0 %806
    %810 = vset.pattern.permute.xlu0 0
    %811 = vperm.xlu0 %810, %v173
    %v812 = vpop.permute.xlu0 %811
    %815 = vset.pattern.permute.xlu0 0
    %816 = vperm.xlu0 %815, %v174
    %v817 = vpop.permute.xlu0 %816
    %820 = vset.pattern.permute.xlu0 0
    %821 = vperm.xlu0 %820, %v175
    %v822 = vpop.permute.xlu0 %821
    %825 = vset.pattern.permute.xlu0 0
    %826 = vperm.xlu0 %825, %v176
    %v827 = vpop.permute.xlu0 %826
    %830 = vset.pattern.permute.xlu0 0
    %831 = vperm.xlu0 %830, %v177
    %v832 = vpop.permute.xlu0 %831
    %835 = vset.pattern.permute.xlu0 0
    %836 = vperm.xlu0 %835, %v178
    %v837 = vpop.permute.xlu0 %836
    %840 = vset.pattern.permute.xlu0 0
    %841 = vperm.xlu0 %840, %v179
    %v842 = vpop.permute.xlu0 %841
    %845 = vset.pattern.permute.xlu0 0
    %846 = vperm.xlu0 %845, %v180
    %v847 = vpop.permute.xlu0 %846
    %850 = vset.pattern.permute.xlu0 0
    %851 = vperm.xlu0 %850, %v181
    %v852 = vpop.permute.xlu0 %851
    %855 = vset.pattern.permute.xlu0 0
    %856 = vperm.xlu0 %855, %v182
    %v857 = vpop.permute.xlu0 %856
    %860 = vset.pattern.permute.xlu0 0
    %861 = vperm.xlu0 %860, %v183
    %v862 = vpop.permute.xlu0 %861
    %865 = vset.pattern.permute.xlu0 0
    %866 = vperm.xlu0 %865, %v184
    %v867 = vpop.permute.xlu0 %866
    %870 = vset.pattern.permute.xlu0 0
    %871 = vperm.xlu0 %870, %v185
    %v872 = vpop.permute.xlu0 %871
    %875 = vset.pattern.permute.xlu0 0
    %876 = vperm.xlu0 %875, %v186
    %v877 = vpop.permute.xlu0 %876
    %880 = vset.pattern.permute.xlu0 0
    %881 = vperm.xlu0 %880, %v187
    %v882 = vpop.permute.xlu0 %881
    %885 = vset.pattern.permute.xlu0 0
    %886 = vperm.xlu0 %885, %v188
    %v887 = vpop.permute.xlu0 %886
    %890 = vset.pattern.permute.xlu0 0
    %891 = vperm.xlu0 %890, %v189
    %v892 = vpop.permute.xlu0 %891
    %895 = vset.pattern.permute.xlu0 0
    %896 = vperm.xlu0 %895, %v190
    %v897 = vpop.permute.xlu0 %896
    %900 = vset.pattern.permute.xlu0 0
    %901 = vperm.xlu0 %900, %v191
    %v902 = vpop.permute.xlu0 %901
    %905 = vset.pattern.permute.xlu0 0
    %906 = vperm.xlu0 %905, %v192
    %v907 = vpop.permute.xlu0 %906
    %910 = vset.pattern.permute.xlu0 0
    %911 = vperm.xlu0 %910, %v193
    %v912 = vpop.permute.xlu0 %911
    %915 = vset.pattern.permute.xlu0 0
    %916 = vperm.xlu0 %915, %v194
    %v917 = vpop.permute.xlu0 %916
    %920 = vset.pattern.permute.xlu0 0
    %921 = vperm.xlu0 %920, %v195
    %v922 = vpop.permute.xlu0 %921
    %925 = vset.pattern.permute.xlu0 0
    %926 = vperm.xlu0 %925, %v196
    %v927 = vpop.permute.xlu0 %926
    %930 = vset.pattern.permute.xlu0 0
    %931 = vperm.xlu0 %930, %v197
    %v932 = vpop.permute.xlu0 %931
    %935 = vset.pattern.permute.xlu0 0
    %936 = vperm.xlu0 %935, %v198
    %v937 = vpop.permute.xlu0 %936
    %940 = vset.pattern.permute.xlu0 0
    %941 = vperm.xlu0 %940, %v199
    %v942 = vpop.permute.xlu0 %941
    %945 = vset.pattern.permute.xlu0 0
    %946 = vperm.xlu0 %945, %v200
    %v947 = vpop.permute.xlu0 %946
    %v949 = vmul.f32 %v792, %v105
    %v950 = vmul.f32 %v797, %v106
    %v951 = vmul.f32 %v802, %v107
    %v952 = vmul.f32 %v807, %v108
    %v953 = vmul.f32 %v812, %v109
    %v954 = vmul.f32 %v817, %v110
    %v955 = vmul.f32 %v822, %v111
    %v956 = vmul.f32 %v827, %v112
    %v957 = vmul.f32 %v832, %v113
    %v958 = vmul.f32 %v837, %v114
    %v959 = vmul.f32 %v842, %v115
    %v960 = vmul.f32 %v847, %v116
    %v961 = vmul.f32 %v852, %v117
    %v962 = vmul.f32 %v857, %v118
    %v963 = vmul.f32 %v862, %v119
    %v964 = vmul.f32 %v867, %v120
    %v965 = vmul.f32 %v872, %v121
    %v966 = vmul.f32 %v877, %v122
    %v967 = vmul.f32 %v882, %v123
    %v968 = vmul.f32 %v887, %v124
    %v969 = vmul.f32 %v892, %v125
    %v970 = vmul.f32 %v897, %v126
    %v971 = vmul.f32 %v902, %v127
    %v972 = vmul.f32 %v907, %v128
    %v973 = vmul.f32 %v912, %v129
    %v974 = vmul.f32 %v917, %v130
    %v975 = vmul.f32 %v922, %v131
    %v976 = vmul.f32 %v927, %v132
    %v977 = vmul.f32 %v932, %v133
    %v978 = vmul.f32 %v937, %v134
    %v979 = vmul.f32 %v942, %v135
    %v980 = vmul.f32 %v947, %v136
    %v981 = vld [vmem:[#allocation2] sm:$0xff]
    %v982 = vld [vmem:[#allocation2 + $0x8] sm:$0xff]
    %v983 = vld [vmem:[#allocation2 + $0x10] sm:$0xff]
    %v984 = vld [vmem:[#allocation2 + $0x18] sm:$0xff]
    %v985 = vld [vmem:[#allocation2 + $0x20] sm:$0xff]
    %v986 = vld [vmem:[#allocation2 + $0x28] sm:$0xff]
    %v987 = vld [vmem:[#allocation2 + $0x30] sm:$0xff]
    %v988 = vld [vmem:[#allocation2 + $0x38] sm:$0xff]
    %v989 = vld [vmem:[#allocation2 + $0x40] sm:$0xff]
    %v990 = vld [vmem:[#allocation2 + $0x48] sm:$0xff]
    %v991 = vld [vmem:[#allocation2 + $0x50] sm:$0xff]
    %v992 = vld [vmem:[#allocation2 + $0x58] sm:$0xff]
    %v993 = vld [vmem:[#allocation2 + $0x60] sm:$0xff]
    %v994 = vld [vmem:[#allocation2 + $0x68] sm:$0xff]
    %v995 = vld [vmem:[#allocation2 + $0x70] sm:$0xff]
    %v996 = vld [vmem:[#allocation2 + $0x78] sm:$0xff]
    %997 = vxpose.xlu0.b32.start [1/16] %v949, 128
    %998 = vxpose.xlu0.b32.cont [2/16] %v950, 128
    %999 = vxpose.xlu0.b32.cont [3/16] %v951, 128
    %1000 = vxpose.xlu0.b32.cont [4/16] %v952, 128
    %1001 = vxpose.xlu0.b32.cont [5/16] %v953, 128
    %1002 = vxpose.xlu0.b32.cont [6/16] %v954, 128
    %1003 = vxpose.xlu0.b32.cont [7/16] %v955, 128
    %1004 = vxpose.xlu0.b32.cont [8/16] %v956, 128
    %1005 = vxpose.xlu0.b32.cont [9/16] %v957, 128
    %1006 = vxpose.xlu0.b32.cont [10/16] %v958, 128
    %1007 = vxpose.xlu0.b32.cont [11/16] %v959, 128
    %1008 = vxpose.xlu0.b32.cont [12/16] %v960, 128
    %1009 = vxpose.xlu0.b32.cont [13/16] %v961, 128
    %1010 = vxpose.xlu0.b32.cont [14/16] %v962, 128
    %1011 = vxpose.xlu0.b32.cont [15/16] %v963, 128
    %1012 = vxpose.xlu0.b32.end [16/16] %v964, 128
    %v1013 = vpop.trf.xlu0
    %v1014 = vpop.trf.xlu0
    %v1015 = vpop.trf.xlu0
    %v1016 = vpop.trf.xlu0
    %v1017 = vpop.trf.xlu0
    %v1018 = vpop.trf.xlu0
    %v1019 = vpop.trf.xlu0
    %v1020 = vpop.trf.xlu0
    %v1021 = vpop.trf.xlu0
    %v1022 = vpop.trf.xlu0
    %v1023 = vpop.trf.xlu0
    %v1024 = vpop.trf.xlu0
    %v1025 = vpop.trf.xlu0
    %v1026 = vpop.trf.xlu0
    %v1027 = vpop.trf.xlu0
    %v1028 = vpop.trf.xlu0
    %1029 = vxpose.xlu0.b32.start [1/16] %v965, 128
    %1030 = vxpose.xlu0.b32.cont [2/16] %v966, 128
    %1031 = vxpose.xlu0.b32.cont [3/16] %v967, 128
    %1032 = vxpose.xlu0.b32.cont [4/16] %v968, 128
    %1033 = vxpose.xlu0.b32.cont [5/16] %v969, 128
    %1034 = vxpose.xlu0.b32.cont [6/16] %v970, 128
    %1035 = vxpose.xlu0.b32.cont [7/16] %v971, 128
    %1036 = vxpose.xlu0.b32.cont [8/16] %v972, 128
    %1037 = vxpose.xlu0.b32.cont [9/16] %v973, 128
    %1038 = vxpose.xlu0.b32.cont [10/16] %v974, 128
    %1039 = vxpose.xlu0.b32.cont [11/16] %v975, 128
    %1040 = vxpose.xlu0.b32.cont [12/16] %v976, 128
    %1041 = vxpose.xlu0.b32.cont [13/16] %v977, 128
    %1042 = vxpose.xlu0.b32.cont [14/16] %v978, 128
    %1043 = vxpose.xlu0.b32.cont [15/16] %v979, 128
    %1044 = vxpose.xlu0.b32.end [16/16] %v980, 128
    %v1045 = vpop.trf.xlu0
    %v1046 = vpop.trf.xlu0
    %v1047 = vpop.trf.xlu0
    %v1048 = vpop.trf.xlu0
    %v1049 = vpop.trf.xlu0
    %v1050 = vpop.trf.xlu0
    %v1051 = vpop.trf.xlu0
    %v1052 = vpop.trf.xlu0
    %v1053 = vpop.trf.xlu0
    %v1054 = vpop.trf.xlu0
    %v1055 = vpop.trf.xlu0
    %v1056 = vpop.trf.xlu0
    %v1057 = vpop.trf.xlu0
    %v1058 = vpop.trf.xlu0
    %v1059 = vpop.trf.xlu0
    %v1060 = vpop.trf.xlu0
    %1061 = vmatprep.subr.mxu0 0.0
    %1062 = vmatpush1.msra.mxu0 %v105
    %1063 = vmatprep.subr.mxu0 0.0
    %1064 = vmatpush1.msra.mxu0 %v106
    %1065 = vmatprep.subr.mxu0 0.0
    %1066 = vmatpush1.msra.mxu0 %v107
    %1067 = vmatprep.subr.mxu0 0.0
    %1068 = vmatpush1.msra.mxu0 %v108
    %1069 = vmatprep.subr.mxu0 0.0
    %1070 = vmatpush1.msra.mxu0 %v109
    %1071 = vmatprep.subr.mxu0 0.0
    %1072 = vmatpush1.msra.mxu0 %v110
    %1073 = vmatprep.subr.mxu0 0.0
    %1074 = vmatpush1.msra.mxu0 %v111
    %1075 = vmatprep.subr.mxu0 0.0
    %1076 = vmatpush1.msra.mxu0 %v112
    %1077 = vmatprep.subr.mxu0 0.0
    %1078 = vmatpush1.msra.mxu0 %v113
    %1079 = vmatprep.subr.mxu0 0.0
    %1080 = vmatpush1.msra.mxu0 %v114
    %1081 = vmatprep.subr.mxu0 0.0
    %1082 = vmatpush1.msra.mxu0 %v115
    %1083 = vmatprep.subr.mxu0 0.0
    %1084 = vmatpush1.msra.mxu0 %v116
    %1085 = vmatprep.subr.mxu0 0.0
    %1086 = vmatpush1.msra.mxu0 %v117
    %1087 = vmatprep.subr.mxu0 0.0
    %1088 = vmatpush1.msra.mxu0 %v118
    %1089 = vmatprep.subr.mxu0 0.0
    %1090 = vmatpush1.msra.mxu0 %v119
    %1091 = vmatprep.subr.mxu0 0.0
    %1092 = vmatpush1.msra.mxu0 %v120
    %1093 = vmatprep.subr.mxu0 0.0
    %1094 = vmatpush1.msra.mxu0 %v121
    %1095 = vmatprep.subr.mxu0 0.0
    %1096 = vmatpush1.msra.mxu0 %v122
    %1097 = vmatprep.subr.mxu0 0.0
    %1098 = vmatpush1.msra.mxu0 %v123
    %1099 = vmatprep.subr.mxu0 0.0
    %1100 = vmatpush1.msra.mxu0 %v124
    %1101 = vmatprep.subr.mxu0 0.0
    %1102 = vmatpush1.msra.mxu0 %v125
    %1103 = vmatprep.subr.mxu0 0.0
    %1104 = vmatpush1.msra.mxu0 %v126
    %1105 = vmatprep.subr.mxu0 0.0
    %1106 = vmatpush1.msra.mxu0 %v127
    %1107 = vmatprep.subr.mxu0 0.0
    %1108 = vmatpush1.msra.mxu0 %v128
    %1109 = vmatprep.subr.mxu0 0.0
    %1110 = vmatpush1.msra.mxu0 %v129
    %1111 = vmatprep.subr.mxu0 0.0
    %1112 = vmatpush1.msra.mxu0 %v130
    %1113 = vmatprep.subr.mxu0 0.0
    %1114 = vmatpush1.msra.mxu0 %v131
    %1115 = vmatprep.subr.mxu0 0.0
    %1116 = vmatpush1.msra.mxu0 %v132
    %1117 = vmatprep.subr.mxu0 0.0
    %1118 = vmatpush1.msra.mxu0 %v133
    %1119 = vmatprep.subr.mxu0 0.0
    %1120 = vmatpush1.msra.mxu0 %v134
    %1121 = vmatprep.subr.mxu0 0.0
    %1122 = vmatpush1.msra.mxu0 %v135
    %1123 = vmatprep.subr.mxu0 0.0
    %1124 = vmatpush1.msra.mxu0 %v136
    %1125 = vmatprep.mubr.f32.mxu0 %v1045
    %1126 = vmatmul.mubr.f32.gmra.mrb[0].mxu0 %v1013
    %v1127 = vpop.f32.mrb[0].mxu0
    %v1128 = vadd.f32 0.0, %v1127
    %v1129 = vpop.f32.mrb[0].mxu0
    %1130 = vmatprep.mubr.f32.mxu0 %v1046
    %1131 = vmatmul.mubr.f32.gmra.mrb[0].mxu0 %v1014
    %v1132 = vpop.f32.mrb[0].mxu0
    %v1133 = vadd.f32 0.0, %v1132
    %v1134 = vpop.f32.mrb[0].mxu0
    %1135 = vmatprep.mubr.f32.mxu0 %v1047
    %1136 = vmatmul.mubr.f32.gmra.mrb[0].mxu0 %v1015
    %v1137 = vpop.f32.mrb[0].mxu0
    %v1138 = vadd.f32 0.0, %v1137
    %v1139 = vpop.f32.mrb[0].mxu0
    %1140 = vmatprep.mubr.f32.mxu0 %v1048
    %1141 = vmatmul.mubr.f32.gmra.mrb[0].mxu0 %v1016
    %v1142 = vpop.f32.mrb[0].mxu0
    %v1143 = vadd.f32 0.0, %v1142
    %v1144 = vpop.f32.mrb[0].mxu0
    %1145 = vmatprep.mubr.f32.mxu0 %v1049
    %1146 = vmatmul.mubr.f32.gmra.mrb[0].mxu0 %v1017
    %v1147 = vpop.f32.mrb[0].mxu0
    %v1148 = vadd.f32 0.0, %v1147
    %v1149 = vpop.f32.mrb[0].mxu0
    %1150 = vmatprep.mubr.f32.mxu0 %v1050
    %1151 = vmatmul.mubr.f32.gmra.mrb[0].mxu0 %v1018
    %v1152 = vpop.f32.mrb[0].mxu0
    %v1153 = vadd.f32 0.0, %v1152
    %v1154 = vpop.f32.mrb[0].mxu0
    %1155 = vmatprep.mubr.f32.mxu0 %v1051
    %1156 = vmatmul.mubr.f32.gmra.mrb[0].mxu0 %v1019
    %v1157 = vpop.f32.mrb[0].mxu0
    %v1158 = vadd.f32 0.0, %v1157
    %v1159 = vpop.f32.mrb[0].mxu0
    %1160 = vmatprep.mubr.f32.mxu0 %v1052
    %1161 = vmatmul.mubr.f32.gmra.mrb[0].mxu0 %v1020
    %v1162 = vpop.f32.mrb[0].mxu0
    %v1163 = vadd.f32 0.0, %v1162
    %v1164 = vpop.f32.mrb[0].mxu0
    %1165 = vmatprep.mubr.f32.mxu0 %v1053
    %1166 = vmatmul.mubr.f32.gmra.mrb[0].mxu0 %v1021
    %v1167 = vpop.f32.mrb[0].mxu0
    %v1168 = vadd.f32 0.0, %v1167
    %v1169 = vpop.f32.mrb[0].mxu0
    %1170 = vmatprep.mubr.f32.mxu0 %v1054
    %1171 = vmatmul.mubr.f32.gmra.mrb[0].mxu0 %v1022
    %v1172 = vpop.f32.mrb[0].mxu0
    %v1173 = vadd.f32 0.0, %v1172
    %v1174 = vpop.f32.mrb[0].mxu0
    %1175 = vmatprep.mubr.f32.mxu0 %v1055
    %1176 = vmatmul.mubr.f32.gmra.mrb[0].mxu0 %v1023
    %v1177 = vpop.f32.mrb[0].mxu0
    %v1178 = vadd.f32 0.0, %v1177
    %v1179 = vpop.f32.mrb[0].mxu0
    %1180 = vmatprep.mubr.f32.mxu0 %v1056
    %1181 = vmatmul.mubr.f32.gmra.mrb[0].mxu0 %v1024
    %v1182 = vpop.f32.mrb[0].mxu0
    %v1183 = vadd.f32 0.0, %v1182
    %v1184 = vpop.f32.mrb[0].mxu0
    %1185 = vmatprep.mubr.f32.mxu0 %v1057
    %1186 = vmatmul.mubr.f32.gmra.mrb[0].mxu0 %v1025
    %v1187 = vpop.f32.mrb[0].mxu0
    %v1188 = vadd.f32 0.0, %v1187
    %v1189 = vpop.f32.mrb[0].mxu0
    %1190 = vmatprep.mubr.f32.mxu0 %v1058
    %1191 = vmatmul.mubr.f32.gmra.mrb[0].mxu0 %v1026
    %v1192 = vpop.f32.mrb[0].mxu0
    %v1193 = vadd.f32 0.0, %v1192
    %v1194 = vpop.f32.mrb[0].mxu0
    %1195 = vmatprep.mubr.f32.mxu0 %v1059
    %1196 = vmatmul.mubr.f32.gmra.mrb[0].mxu0 %v1027
    %v1197 = vpop.f32.mrb[0].mxu0
    %v1198 = vadd.f32 0.0, %v1197
    %v1199 = vpop.f32.mrb[0].mxu0
    %1200 = vmatprep.mubr.f32.mxu0 %v1060
    %1201 = vmatmul.mubr.f32.gmra.mrb[0].mxu0 %v1028
    %v1202 = vpop.f32.mrb[0].mxu0
    %v1203 = vadd.f32 0.0, %v1202
    %v1204 = vpop.f32.mrb[0].mxu0
    %1205 = vdwg.mxu0
    %v1206 = vadd.f32 %v981, %v1128
    %v1207 = vadd.f32 %v982, %v1133
    %v1208 = vadd.f32 %v983, %v1138
    %v1209 = vadd.f32 %v984, %v1143
    %v1210 = vadd.f32 %v985, %v1148
    %v1211 = vadd.f32 %v986, %v1153
    %v1212 = vadd.f32 %v987, %v1158
    %v1213 = vadd.f32 %v988, %v1163
    %v1214 = vadd.f32 %v989, %v1168
    %v1215 = vadd.f32 %v990, %v1173
    %v1216 = vadd.f32 %v991, %v1178
    %v1217 = vadd.f32 %v992, %v1183
    %v1218 = vadd.f32 %v993, %v1188
    %v1219 = vadd.f32 %v994, %v1193
    %v1220 = vadd.f32 %v995, %v1198
    %v1221 = vadd.f32 %v996, %v1203
    %1222 = vst [vmem:[#allocation2] sm:$0xff] %v1206
    %1223 = vst [vmem:[#allocation2 + $0x8] sm:$0xff] %v1207
    %1224 = vst [vmem:[#allocation2 + $0x10] sm:$0xff] %v1208
    %1225 = vst [vmem:[#allocation2 + $0x18] sm:$0xff] %v1209
    %1226 = vst [vmem:[#allocation2 + $0x20] sm:$0xff] %v1210
    %1227 = vst [vmem:[#allocation2 + $0x28] sm:$0xff] %v1211
    %1228 = vst [vmem:[#allocation2 + $0x30] sm:$0xff] %v1212
    %1229 = vst [vmem:[#allocation2 + $0x38] sm:$0xff] %v1213
    %1230 = vst [vmem:[#allocation2 + $0x40] sm:$0xff] %v1214
    %1231 = vst [vmem:[#allocation2 + $0x48] sm:$0xff] %v1215
    %1232 = vst [vmem:[#allocation2 + $0x50] sm:$0xff] %v1216
    %1233 = vst [vmem:[#allocation2 + $0x58] sm:$0xff] %v1217
    %1234 = vst [vmem:[#allocation2 + $0x60] sm:$0xff] %v1218
    %1235 = vst [vmem:[#allocation2 + $0x68] sm:$0xff] %v1219
    %1236 = vst [vmem:[#allocation2 + $0x70] sm:$0xff] %v1220
    %1237 = vst [vmem:[#allocation2 + $0x78] sm:$0xff] %v1221
    // Predicated region
    $region18: #{tpu_custom_call.1} parent=1 // pred_check
      _
    $region19: #{tpu_custom_call.1} parent=1 // pred_check_branch
      %1239 = sbr.rel (0) target = $region21
    $region20: #{tpu_custom_call.1} parent=1 // pred_region
      %s1241 = ssub.s32 2048, 2048
      %1242 = vsyncadd [#allocation3], %s1241
      %s1243 = sshll.u32 [#allocation2], 4
      %s1244 = int_to_ptr.vmem [resolvable:$true] %s1243
      %1249 = dma.vmem_to_hbm [thread:$0]  %s1244, 2048, %s3, [#allocation3], 128, 128, 8
    $region21: #{tpu_custom_call.1} parent=1 // pred_fallthru
      _
    // Predicated region
    $region22: #{tpu_custom_call.1} parent=1 // pred_check
      _
    $region23: #{tpu_custom_call.1} parent=1 // pred_check_branch
      %1251 = sbr.rel (0) target = $region25
    $region24: #{tpu_custom_call.1} parent=1 // pred_region
      %s1253 = ssub.s32 128, 128
      %1254 = vsyncadd [#allocation5], %s1253
      %s1256 = sshll.u32 [#allocation4], 4
      %s1257 = int_to_ptr.vmem [resolvable:$true] %s1256
      %1259 = dma.vmem_to_hbm [thread:$0]  %s1257, 128, %s4, [#allocation5]
    $region25: #{tpu_custom_call.1} parent=1 // pred_fallthru
      _
    // Predicated region
    $region26: #{tpu_custom_call.1} parent=1 // pred_check
      _
    $region27: #{tpu_custom_call.1} parent=1 // pred_check_branch
      %1261 = sbr.rel (0) target = $region29
    $region28: #{tpu_custom_call.1} parent=1 // pred_region
      %1262 = dma.done [#allocation3], 2048
    $region29: #{tpu_custom_call.1} parent=1 // pred_fallthru
      _
    // Predicated region
    $region30: #{tpu_custom_call.1} parent=1 // pred_check
      _
    $region31: #{tpu_custom_call.1} parent=1 // pred_check_branch
      %1264 = sbr.rel (0) target = $region33
    $region32: #{tpu_custom_call.1} parent=1 // pred_region
      %1265 = dma.done [#allocation5], 128
    $region33: #{tpu_custom_call.1} parent=1 // pred_fallthru
      _
    %1266 = vsyncpa [#allocation3], 1
    %1267 = vsyncpa [#allocation5], 1

</llo_original>
